<compile_context>
chip_gen: v7x
topology: tpu7x:2x2x1
jax: 0.10.0
libtpu: 0.0.40
codegen_flags: <defaults>
</compile_context>

<pallas_src>
import jax
import jax.numpy as jnp
from jax.experimental import pallas as pl
from jax.experimental.pallas import tpu as pltpu


# ---------------------------------------------------------------------------
# Path 1: aliased no-op kernel (zero-copy identity).
# ---------------------------------------------------------------------------
def _alias_noop_kernel(src_ref, out_ref):
    # Output buffer IS the input buffer (input_output_aliases={0: 0}); no data
    # movement is needed.  touch() only pins ordering so the aliased output is
    # considered produced by this kernel.
    del src_ref
    pltpu.touch(out_ref)


def _aliased_identity(x):
    """Return x "through" a Pallas kernel with the output aliased to the input."""
    return pl.pallas_call(
        _alias_noop_kernel,
        out_shape=jax.ShapeDtypeStruct(x.shape, x.dtype),
        in_specs=[pl.BlockSpec(memory_space=pl.ANY)],
        out_specs=pl.BlockSpec(memory_space=pl.ANY),
        input_output_aliases={0: 0},
        compiler_params=pltpu.CompilerParams(has_side_effects=True),
    )(x)


# ---------------------------------------------------------------------------
# Path 2: single HBM->HBM DMA copy (no VMEM staging, no grid).
# ---------------------------------------------------------------------------
def _dma_copy_kernel(src_ref, out_ref, sem):
    cp = pltpu.make_async_copy(src_ref, out_ref, sem)
    cp.start()
    cp.wait()


def _hbm_dma_copy(x):
    """Materialize a copy of x with one direct HBM->HBM DMA."""
    return pl.pallas_call(
        _dma_copy_kernel,
        out_shape=jax.ShapeDtypeStruct(x.shape, x.dtype),
        in_specs=[pl.BlockSpec(memory_space=pl.ANY)],
        out_specs=pl.BlockSpec(memory_space=pl.ANY),
        scratch_shapes=[pltpu.SemaphoreType.DMA],
    )(x)


# ---------------------------------------------------------------------------
# Module-equivalent wrapper.
# ---------------------------------------------------------------------------
def dummy_transformer_forward(src, tgt, src_mask, tgt_mask, *, force_copy=False):
    """Pallas equivalent of DummyTransformer.forward.

    src:      (B, S, D)
    tgt, src_mask, tgt_mask: accepted for signature parity, unused (as in torch).
    returns:  (B, 1, S, D)  == src.unsqueeze(1)
    """
    del tgt, src_mask, tgt_mask  # unused, exactly like the PyTorch module

    B, S, D = src.shape
    # unsqueeze(1): pure metadata reshape over the same contiguous bytes.
    src4 = src.reshape(B, 1, S, D)

    if force_copy:
        return _hbm_dma_copy(src4)

    try:
        # Preferred: zero-traffic aliased identity.
        return _aliased_identity(src4)
    except Exception:
        # Robust fallback if the aliased no-op cannot be lowered on this
        # backend/version: one direct HBM->HBM DMA copy (still far cheaper
        # than a VMEM-staged grid pipeline).
        return _hbm_dma_copy(src4)


if __name__ == "__main__":
    key = jax.random.PRNGKey(0)
    k_src, k_tgt = jax.random.split(key)

    B, S, D = 2, 8, 32
    src = jax.random.normal(k_src, (B, S, D), dtype=jnp.float32)
    tgt = jax.random.normal(k_tgt, (B, S, D), dtype=jnp.float32)
    src_mask = jnp.ones((B, 1, S), dtype=jnp.float32)
    tgt_mask = jnp.ones((B, S, S), dtype=jnp.float32)

    # Primary (aliased / zero-copy) path.
    out = dummy_transformer_forward(src, tgt, src_mask, tgt_mask)
    out = jax.block_until_ready(out)
    assert out.shape == (B, 1, S, D), out.shape
    assert out.dtype == src.dtype
    assert bool(jnp.allclose(out[:, 0], src)), "aliased identity mismatch"

    # Explicit-copy (HBM->HBM DMA) path.
    out2 = dummy_transformer_forward(src, tgt, src_mask, tgt_mask, force_copy=True)
    out2 = jax.block_until_ready(out2)
    assert out2.shape == (B, 1, S, D), out2.shape
    assert bool(jnp.allclose(out2[:, 0], src)), "DMA copy mismatch"

    print("KERNEL_OK")
</pallas_src>

<mosaic_0001>
module attributes {stable_mosaic.version = 11 : i64} {
  func.func @_alias_noop_kernel(%arg0: memref<2x1x8x32xf32, #tpu.memory_space<any>>, %arg1: memref<2x1x8x32xf32, #tpu.memory_space<any>>) attributes {dimension_semantics = [], scalar_prefetch = 0 : i64, scratch_operands = 0 : i64, tpu.core_type = #tpu.core_type<tc>} {
    return
  }
}

module attributes {stable_mosaic.version = 11 : i64} {
  func.func @_dma_copy_kernel(%arg0: memref<2x1x8x32xf32, #tpu.memory_space<any>>, %arg1: memref<2x1x8x32xf32, #tpu.memory_space<any>>, %arg2: memref<!tpu.dma_semaphore, #tpu.memory_space<semaphore_mem>>) attributes {dimension_semantics = [], scalar_prefetch = 0 : i64, scratch_operands = 1 : i64, tpu.core_type = #tpu.core_type<tc>} {
    tpu.enqueue_dma source(%arg0 : memref<2x1x8x32xf32, #tpu.memory_space<any>>) target(%arg1 : memref<2x1x8x32xf32, #tpu.memory_space<any>>) target_semaphore(%arg2 : memref<!tpu.dma_semaphore, #tpu.memory_space<semaphore_mem>>)
    tpu.wait_dma2 semaphore(%arg2 : memref<!tpu.dma_semaphore, #tpu.memory_space<semaphore_mem>>) src(%arg0 : memref<2x1x8x32xf32, #tpu.memory_space<any>>) dst(%arg1 : memref<2x1x8x32xf32, #tpu.memory_space<any>>)
    return
  }
}

</mosaic_0001>

<llo_original>
// kernel: tpu_custom_call.1
$region0: #{tpu_custom_call.1}
  #allocation0 [shape = 'u32[]', space=smem, size = 0x4, offset = 0x4, fixed_abs, tag = 'smem constant byte address 0x4 - core index']
  #allocation1 [shape = 'u32[144,128]{1,0:T(1,128)}', space=vmem, size = 0x12000, scoped, tag = 'internal scratch']
  %s0 = inlined_call_operand.hbm [shape: f32[2,1,8,32], index: 0, kind: input, shape index: {}, may-alias: {0,1}]
  %s1 = inlined_call_operand.hbm [shape: f32[2,1,8,32], index: 1, kind: output, shape index: {}, may-alias: {0,1}]
  %s2 = sld [smem:[#allocation0]]
  $region2: #{tpu_custom_call.1} parent=0
    _
  %s4 = ssub.s32 1, %s2
  %s5 = scalar_select 0, %s4, %s2

// kernel: tpu_custom_call.1
$region0: #{tpu_custom_call.1}
  #allocation0 [shape = 'u32[]', space=smem, size = 0x4, offset = 0x4, fixed_abs, tag = 'smem constant byte address 0x4 - core index']
  #allocation1 [shape = 'u32[144,128]{1,0:T(1,128)}', space=vmem, size = 0x12000, scoped, tag = 'internal scratch']
  #allocation2 [shape = 's32[1]{0}', space=sflag, size = 0x4, scoped, tag = 'scratch operand']
  #allocation3 [shape = 's32[]', space=sflag, size = 0x4, offset = 0, fixed_abs, tag = 'sflag constant byte address 0x0 - dummy sync flag']
  #allocation4 [shape = 'u32[0]{0}', space=smem, size = 0, offset = 0, fixed_abs, tag = 'smem constant byte address 0x0 - null']
  %s0 = inlined_call_operand.hbm [shape: f32[2,1,8,32], index: 0, kind: input, shape index: {}]
  %s1 = inlined_call_operand.hbm [shape: f32[2,1,8,32], index: 1, kind: output, shape index: {}]
  %s2 = sld [smem:[#allocation0]]
  $region2: #{tpu_custom_call.1} parent=0
    _
  %s4 = ssub.s32 1, %s2
  %s5 = scalar_select 0, %s4, %s2
  %s7 = sshll.u32 1, 14
  %s8 = sxor.u32 4294967295, %s7
  %s11 = sshll.u32 3, 24
  %s12 = sxor.u32 4294967295, %s11
  %s13 = sand.u32 0, %s12
  %s15 = sor.u32 %s13, 0
  %18 = dma.general %s0, 256, %s1, [#allocation2], [#allocation3], [#allocation4], %s15, 0
  %s19 = smul.u32 2, 1
  %s20 = smul.u32 %s19, 8
  %s21 = smul.u32 %s20, 1
  %s22 = sshll.u32 %s21, 4
  %23 = dma.done [#allocation2], %s22
  %24 = vsyncmov [#allocation2]
  %s25 = vpop.sfrf %24
  %p26 = scmp.eq.s32.totalorder %s25, 0
  %p27 = pneg %p26
  %29 = shalt.err (%p27)

</llo_original>
